<compile_context>
chip_gen: v6e
topology: v6e:2x2x1
jax: 0.10.0
libtpu: 0.0.40
codegen_flags: <defaults>
</compile_context>

<pallas_src>
import functools

import jax
import jax.numpy as jnp
from jax.experimental import pallas as pl
from jax.experimental.pallas import tpu as pltpu


def _int_pow(x, n):
    """x**n for a small non-negative integer n via a multiply chain (no exp/log)."""
    if n == 0:
        return jnp.ones_like(x)
    result = None
    base = x
    while n > 0:
        if n & 1:
            result = base if result is None else result * base
        n >>= 1
        if n:
            base = base * base
    return result


def _focal_loss_kernel(logits_ref, target_ref, weight_ref,
                       num_ref, den_ref, *, gamma, ignore_index):
    x = logits_ref[...].astype(jnp.float32)            # (TN, C)
    t = target_ref[...]                                # (TN, 1) int32
    w = weight_ref[...].astype(jnp.float32)            # (1, C)

    # log-softmax pieces; exp(shifted) is computed ONCE and reused for pt.
    m = jnp.max(x, axis=-1, keepdims=True)             # (TN, 1)
    shifted = x - m                                    # (TN, C)
    e = jnp.exp(shifted)                               # (TN, C)  1 exp / element
    s = jnp.sum(e, axis=-1, keepdims=True)             # (TN, 1)
    log_s = jnp.log(s)                                 # (TN, 1)  1 log / row

    # one-hot gather of the target class (ignored / padded rows never match)
    col = jax.lax.broadcasted_iota(jnp.int32, x.shape, 1)
    onehot = (col == t).astype(jnp.float32)            # (TN, C)
    valid = (t != ignore_index).astype(jnp.float32)    # (TN, 1)

    shifted_t = jnp.sum(shifted * onehot, axis=-1, keepdims=True)  # (TN, 1)
    e_t = jnp.sum(e * onehot, axis=-1, keepdims=True)              # (TN, 1)
    w_t = jnp.sum(w * onehot, axis=-1, keepdims=True)              # (TN, 1)

    logpt_t = shifted_t - log_s                        # log p_target
    pt_t = e_t / s                                     # p_target (exact, <= 1)
    one_minus_pt = jnp.maximum(1.0 - pt_t, 0.0)        # clamp against rounding

    gi = int(gamma)
    if float(gamma) == float(gi) and 0 <= gi <= 8:
        focal_fac = _int_pow(one_minus_pt, gi)         # no exp/log for int gamma
    else:
        focal_fac = one_minus_pt ** gamma
    focal_t = focal_fac * logpt_t                      # (TN, 1)

    num_partial = jnp.sum(-focal_t * w_t * valid)      # per-tile scalar
    den_partial = jnp.sum(w_t * valid)

    # Lane-dense, unmasked stores: broadcast the tile partials over (1, 8, 128).
    num_ref[...] = jnp.full(num_ref.shape, num_partial, dtype=num_ref.dtype)
    den_ref[...] = jnp.full(den_ref.shape, den_partial, dtype=den_ref.dtype)


def _choose_tile_n(n_padded, c, target_bytes=2 << 20):
    """Pick an N tile: ~target_bytes of logits per tile, multiple of 8, <= 1024."""
    rows = max(8, target_bytes // (4 * max(c, 1)))
    rows = min(rows, 1024, n_padded)
    return max(8, (rows // 8) * 8)


def focal_loss(logits, target, weight, *, gamma=2.0, ignore_index=-100,
               tile_n=None):
    """logits: [N, C] float, target: [N] int, weight: [C] float -> scalar f32."""
    N, C = logits.shape

    n_pad8 = ((N + 7) // 8) * 8
    if tile_n is None:
        tile_n = _choose_tile_n(n_pad8, C)
    assert tile_n % 8 == 0 and tile_n >= 8, "tile_n must be a multiple of 8"

    num_tiles = (N + tile_n - 1) // tile_n
    n_padded = num_tiles * tile_n

    logits_f = logits.astype(jnp.float32)
    target_i = target.astype(jnp.int32)
    if n_padded != N:
        logits_f = jnp.pad(logits_f, ((0, n_padded - N), (0, 0)))
        target_i = jnp.pad(target_i, (0, n_padded - N),
                           constant_values=int(ignore_index))
    target2d = target_i.reshape(n_padded, 1)
    weight2d = jnp.asarray(weight, dtype=jnp.float32).reshape(1, C)

    kernel = functools.partial(_focal_loss_kernel,
                               gamma=float(gamma),
                               ignore_index=int(ignore_index))

    out_num, out_den = pl.pallas_call(
        kernel,
        out_shape=(jax.ShapeDtypeStruct((num_tiles, 8, 128), jnp.float32),
                   jax.ShapeDtypeStruct((num_tiles, 8, 128), jnp.float32)),
        grid_spec=pltpu.PrefetchScalarGridSpec(
            num_scalar_prefetch=0,
            grid=(num_tiles,),
            in_specs=[
                # NOTE: if profiling shows the logits DMA is still exposed at
                # very large C, add pipeline_mode=pl.Buffered(3) here.
                pl.BlockSpec((tile_n, C), lambda i: (i, 0)),
                pl.BlockSpec((tile_n, 1), lambda i: (i, 0)),
                pl.BlockSpec((1, C), lambda i: (0, 0)),
            ],
            out_specs=(pl.BlockSpec((1, 8, 128), lambda i: (i, 0, 0)),
                       pl.BlockSpec((1, 8, 128), lambda i: (i, 0, 0))),
        ),
        compiler_params=pltpu.CompilerParams(
            dimension_semantics=("parallel",)),
    )(logits_f, target2d, weight2d)

    num = jnp.sum(out_num[:, 0, 0])
    den = jnp.sum(out_den[:, 0, 0])
    # Note: if every row has target == ignore_index, den == 0 and the result
    # is NaN, matching F.nll_loss(reduction='mean') behavior.
    # TODO(synk): for very small C, a lane-dense packing (8 samples per
    # 128-lane row with segmented pltpu.roll reductions) is a further lever.
    return num / den


def _reference_focal_loss(logits, target, weight, gamma=2.0, ignore_index=-100):
    logpt = jax.nn.log_softmax(logits.astype(jnp.float32), axis=1)
    pt = jnp.exp(logpt)
    focal = (1.0 - pt) ** gamma * logpt
    onehot = jax.nn.one_hot(jnp.where(target == ignore_index, 0, target),
                            logits.shape[1], dtype=jnp.float32)
    onehot = onehot * (target != ignore_index).astype(jnp.float32)[:, None]
    picked = jnp.sum(focal * onehot, axis=1)
    w_picked = jnp.sum(weight[None, :] * onehot, axis=1)
    num = jnp.sum(-picked * w_picked)
    den = jnp.sum(w_picked)
    return num / den


if __name__ == "__main__":
    gamma = 2.0
    ignore_index = -100
    key = jax.random.PRNGKey(0)

    # Case 1: N=128, C=16 (single tile, auto tile_n).
    N, C = 128, 16
    k_logits, k_target = jax.random.split(key)
    logits = jax.random.normal(k_logits, (N, C), dtype=jnp.float32)
    target = jax.random.randint(k_target, (N,), 0, C, dtype=jnp.int32)
    target = target.at[3].set(ignore_index).at[77].set(ignore_index)
    weight = 0.5 + 0.1 * jnp.arange(C, dtype=jnp.float32)

    loss = jax.block_until_ready(
        focal_loss(logits, target, weight, gamma=gamma,
                   ignore_index=ignore_index))
    ref = _reference_focal_loss(logits, target, weight, gamma=gamma,
                                ignore_index=ignore_index)
    assert jnp.allclose(loss, ref, rtol=1e-5, atol=1e-5), (loss, ref)

    # Case 2: N=200 (not tile-aligned), explicit tile_n=64 -> padding + 4 tiles,
    # exercising the parallel per-tile partial path.
    N2 = 200
    k2a, k2b = jax.random.split(jax.random.PRNGKey(1))
    logits2 = jax.random.normal(k2a, (N2, C), dtype=jnp.float32)
    target2 = jax.random.randint(k2b, (N2,), 0, C, dtype=jnp.int32)
    target2 = target2.at[10].set(ignore_index)

    loss2 = jax.block_until_ready(
        focal_loss(logits2, target2, weight, gamma=gamma,
                   ignore_index=ignore_index, tile_n=64))
    ref2 = _reference_focal_loss(logits2, target2, weight, gamma=gamma,
                                 ignore_index=ignore_index)
    assert jnp.allclose(loss2, ref2, rtol=1e-5, atol=1e-5), (loss2, ref2)

    print("KERNEL_OK")
</pallas_src>

<mosaic_0001>
module attributes {stable_mosaic.version = 11 : i64} {
  func.func @_focal_loss_kernel(%arg0: i32, %arg1: memref<128x16xf32, #tpu.memory_space<vmem>>, %arg2: memref<128x1xi32, #tpu.memory_space<vmem>>, %arg3: memref<1x16xf32, #tpu.memory_space<vmem>>, %arg4: memref<1x8x128xf32, #tpu.memory_space<vmem>>, %arg5: memref<1x8x128xf32, #tpu.memory_space<vmem>>) attributes {dimension_semantics = [#tpu.dimension_semantics<parallel>], iteration_bounds = array<i64: 1>, scalar_prefetch = 0 : i64, scratch_operands = 0 : i64, tpu.core_type = #tpu.core_type<tc>, window_params = [{transform_indices = @transform_0, window_bounds = array<i64: 128, 16>}, {transform_indices = @transform_1, window_bounds = array<i64: 128, 1>}, {pipeline_mode = #tpu.pipeline_mode<synchronous>, transform_indices = @transform_2, window_bounds = array<i64: 1, 16>}, {transform_indices = @transform_3, window_bounds = array<i64: 1, 8, 128>}, {transform_indices = @transform_4, window_bounds = array<i64: 1, 8, 128>}]} {
    %c0 = arith.constant 0 : index
    %c0_0 = arith.constant 0 : index
    %0 = vector.load %arg1[%c0, %c0_0] : memref<128x16xf32, #tpu.memory_space<vmem>>, vector<128x16xf32>
    %c0_1 = arith.constant 0 : index
    %c0_2 = arith.constant 0 : index
    %1 = vector.load %arg2[%c0_1, %c0_2] : memref<128x1xi32, #tpu.memory_space<vmem>>, vector<128x1xi32>
    %c0_3 = arith.constant 0 : index
    %c0_4 = arith.constant 0 : index
    %2 = vector.load %arg3[%c0_3, %c0_4] : memref<1x16xf32, #tpu.memory_space<vmem>>, vector<1x16xf32>
    %cst = arith.constant dense<0xFF800000> : vector<128xf32>
    %3 = vector.multi_reduction <maximumf>, %0, %cst [1] : vector<128x16xf32> to vector<128xf32>
    %4 = vector.shape_cast %3 : vector<128xf32> to vector<128x1xf32>
    %5 = vector.broadcast %4 : vector<128x1xf32> to vector<128x16xf32>
    %6 = arith.subf %0, %5 : vector<128x16xf32>
    %7 = math.exp %6 : vector<128x16xf32>
    %cst_5 = arith.constant dense<0.000000e+00> : vector<128xf32>
    %8 = vector.multi_reduction <add>, %7, %cst_5 [1] : vector<128x16xf32> to vector<128xf32>
    %9 = vector.shape_cast %8 : vector<128xf32> to vector<128x1xf32>
    %10 = math.log %9 : vector<128x1xf32>
    %11 = tpu.iota {dimensions = array<i32: 1>} : vector<128x16xi32>
    %12 = vector.broadcast %1 : vector<128x1xi32> to vector<128x16xi32>
    %13 = arith.cmpi eq, %11, %12 : vector<128x16xi32>
    %14 = arith.extui %13 : vector<128x16xi1> to vector<128x16xi32>
    %15 = arith.sitofp %14 : vector<128x16xi32> to vector<128x16xf32>
    %c-100_i32 = arith.constant -100 : i32
    %16 = vector.broadcast %c-100_i32 : i32 to vector<128x1xi32>
    %17 = arith.cmpi ne, %1, %16 : vector<128x1xi32>
    %18 = arith.extui %17 : vector<128x1xi1> to vector<128x1xi32>
    %19 = arith.sitofp %18 : vector<128x1xi32> to vector<128x1xf32>
    %20 = arith.mulf %6, %15 : vector<128x16xf32>
    %cst_6 = arith.constant dense<0.000000e+00> : vector<128xf32>
    %21 = vector.multi_reduction <add>, %20, %cst_6 [1] : vector<128x16xf32> to vector<128xf32>
    %22 = vector.shape_cast %21 : vector<128xf32> to vector<128x1xf32>
    %23 = arith.mulf %7, %15 : vector<128x16xf32>
    %cst_7 = arith.constant dense<0.000000e+00> : vector<128xf32>
    %24 = vector.multi_reduction <add>, %23, %cst_7 [1] : vector<128x16xf32> to vector<128xf32>
    %25 = vector.shape_cast %24 : vector<128xf32> to vector<128x1xf32>
    %26 = vector.broadcast %2 : vector<1x16xf32> to vector<128x16xf32>
    %27 = arith.mulf %26, %15 : vector<128x16xf32>
    %cst_8 = arith.constant dense<0.000000e+00> : vector<128xf32>
    %28 = vector.multi_reduction <add>, %27, %cst_8 [1] : vector<128x16xf32> to vector<128xf32>
    %29 = vector.shape_cast %28 : vector<128xf32> to vector<128x1xf32>
    %30 = arith.subf %22, %10 : vector<128x1xf32>
    %31 = arith.divf %25, %9 : vector<128x1xf32>
    %cst_9 = arith.constant 1.000000e+00 : f32
    %32 = vector.broadcast %cst_9 : f32 to vector<128x1xf32>
    %33 = arith.subf %32, %31 : vector<128x1xf32>
    %cst_10 = arith.constant 0.000000e+00 : f32
    %34 = vector.broadcast %cst_10 : f32 to vector<128x1xf32>
    %35 = arith.maximumf %33, %34 : vector<128x1xf32>
    %36 = arith.mulf %35, %35 : vector<128x1xf32>
    %37 = arith.mulf %36, %30 : vector<128x1xf32>
    %cst_11 = arith.constant 0.000000e+00 : f32
    %38 = vector.broadcast %cst_11 : f32 to vector<128x1xf32>
    %39 = arith.subf %38, %37 : vector<128x1xf32>
    %40 = arith.mulf %39, %29 : vector<128x1xf32>
    %41 = arith.mulf %40, %19 : vector<128x1xf32>
    %42 = vector.shape_cast %41 : vector<128x1xf32> to vector<1x128x1xf32>
    %cst_12 = arith.constant dense<0.000000e+00> : vector<1xf32>
    %43 = vector.multi_reduction <add>, %42, %cst_12 [1, 2] : vector<1x128x1xf32> to vector<1xf32>
    %44 = vector.shape_cast %43 : vector<1xf32> to vector<1x1x1xf32>
    %45 = vector.extract %44[0, 0, 0] : f32 from vector<1x1x1xf32>
    %46 = arith.mulf %29, %19 : vector<128x1xf32>
    %47 = vector.shape_cast %46 : vector<128x1xf32> to vector<1x128x1xf32>
    %cst_13 = arith.constant dense<0.000000e+00> : vector<1xf32>
    %48 = vector.multi_reduction <add>, %47, %cst_13 [1, 2] : vector<1x128x1xf32> to vector<1xf32>
    %49 = vector.shape_cast %48 : vector<1xf32> to vector<1x1x1xf32>
    %50 = vector.extract %49[0, 0, 0] : f32 from vector<1x1x1xf32>
    %51 = vector.broadcast %45 : f32 to vector<1x8x128xf32>
    %c0_14 = arith.constant 0 : index
    %c0_15 = arith.constant 0 : index
    %c0_16 = arith.constant 0 : index
    %52 = vector.load %arg4[%c0_14, %c0_15, %c0_16] : memref<1x8x128xf32, #tpu.memory_space<vmem>>, vector<1x8x128xf32>
    tpu.vector_store %arg4[%c0_14, %c0_15, %c0_16], %51 {strides = array<i32>} : memref<1x8x128xf32, #tpu.memory_space<vmem>>, vector<1x8x128xf32>,
    %53 = vector.broadcast %50 : f32 to vector<1x8x128xf32>
    %c0_17 = arith.constant 0 : index
    %c0_18 = arith.constant 0 : index
    %c0_19 = arith.constant 0 : index
    %54 = vector.load %arg5[%c0_17, %c0_18, %c0_19] : memref<1x8x128xf32, #tpu.memory_space<vmem>>, vector<1x8x128xf32>
    tpu.vector_store %arg5[%c0_17, %c0_18, %c0_19], %53 {strides = array<i32>} : memref<1x8x128xf32, #tpu.memory_space<vmem>>, vector<1x8x128xf32>,
    return
  }
  func.func @transform_0(%arg0: i32) -> (i32, i32) {
    %c0_i32 = arith.constant 0 : i32
    %c0_i32_0 = arith.constant 0 : i32
    return %arg0, %c0_i32 : i32, i32
  }
  func.func @transform_1(%arg0: i32) -> (i32, i32) {
    %c0_i32 = arith.constant 0 : i32
    %c0_i32_0 = arith.constant 0 : i32
    return %arg0, %c0_i32 : i32, i32
  }
  func.func @transform_2(%arg0: i32) -> (i32, i32) {
    %c0_i32 = arith.constant 0 : i32
    %c0_i32_0 = arith.constant 0 : i32
    %c0_i32_1 = arith.constant 0 : i32
    return %c0_i32, %c0_i32_0 : i32, i32
  }
  func.func @transform_3(%arg0: i32) -> (i32, i32, i32) {
    %c0_i32 = arith.constant 0 : i32
    %c0_i32_0 = arith.constant 0 : i32
    %c0_i32_1 = arith.constant 0 : i32
    return %arg0, %c0_i32, %c0_i32_0 : i32, i32, i32
  }
  func.func @transform_4(%arg0: i32) -> (i32, i32, i32) {
    %c0_i32 = arith.constant 0 : i32
    %c0_i32_0 = arith.constant 0 : i32
    %c0_i32_1 = arith.constant 0 : i32
    return %arg0, %c0_i32, %c0_i32_0 : i32, i32, i32
  }
}

</mosaic_0001>

<llo_original>
// kernel: tpu_custom_call.1
$region0: #{tpu_custom_call.1}
  #allocation0 [shape = 'u32[]', space=smem, size = 0x4, offset = 0x4, fixed_abs, tag = 'smem constant byte address 0x4 - core index']
  #allocation1 [shape = 'u32[144,128]{1,0:T(1,128)}', space=vmem, size = 0x12000, scoped, tag = 'internal scratch']
  %s0 = inlined_call_operand.vmem [shape: f32[128,16], index: 0, kind: input, shape index: {}]
  %s1 = inlined_call_operand.vmem [shape: s32[128,1], index: 1, kind: input, shape index: {}]
  %s2 = inlined_call_operand.vmem [shape: f32[1,16], index: 2, kind: input, shape index: {}]
  %s3 = inlined_call_operand.hbm [shape: f32[1,8,128], index: 3, kind: output, shape index: {0}]
  %s4 = inlined_call_operand.hbm [shape: f32[1,8,128], index: 4, kind: output, shape index: {1}]
  %5 = xla_tuple %s3, %s4
  %s6 = sld [smem:[#allocation0]]
  $region30: #{tpu_custom_call.1} parent=0
    _
  %s8 = ssub.s32 1, %s6
  %s9 = scalar_select 0, %s8, %s6
  $region1: #{tpu_custom_call.1} parent=0
    #allocation2 [shape = 'u8[4096]{0}', space=vmem, size = 0x1000, scoped, tag = 'output window, operand 0, single buffered']
    #allocation3 [shape = 's32[1]{0}', space=sflag, size = 0x4, scoped, tag = 'scoped memory for tpu_custom_call.1']
    #allocation4 [shape = 'u8[4096]{0}', space=vmem, size = 0x1000, scoped, tag = 'output window, operand 1, single buffered']
    #allocation5 [shape = 's32[1]{0}', space=sflag, size = 0x4, scoped, tag = 'scoped memory for tpu_custom_call.1']
    %10 = vsyncpa [#allocation3], 0
    %11 = vsyncpa [#allocation5], 0
    // Predicated region
    $region2: #{tpu_custom_call.1} parent=1 // pred_check
      _
    $region3: #{tpu_custom_call.1} parent=1 // pred_check_branch
      %13 = sbr.rel (0) target = $region5
    $region4: #{tpu_custom_call.1} parent=1 // pred_region
      _
    $region5: #{tpu_custom_call.1} parent=1 // pred_fallthru
      _
    // Predicated region
    $region6: #{tpu_custom_call.1} parent=1 // pred_check
      _
    $region7: #{tpu_custom_call.1} parent=1 // pred_check_branch
      %15 = sbr.rel (0) target = $region9
    $region8: #{tpu_custom_call.1} parent=1 // pred_region
      _
    $region9: #{tpu_custom_call.1} parent=1 // pred_fallthru
      _
    // Predicated region
    $region10: #{tpu_custom_call.1} parent=1 // pred_check
      _
    $region11: #{tpu_custom_call.1} parent=1 // pred_check_branch
      %17 = sbr.rel (0) target = $region13
    $region12: #{tpu_custom_call.1} parent=1 // pred_region
      _
    $region13: #{tpu_custom_call.1} parent=1 // pred_fallthru
      _
    %v18 = vld [vmem:[%s0] sm:$0xff]
    %v19 = vld [vmem:[%s0 + $0x8] sm:$0xff]
    %v20 = vld [vmem:[%s0 + $0x10] sm:$0xff]
    %v21 = vld [vmem:[%s0 + $0x18] sm:$0xff]
    %v22 = vld [vmem:[%s0 + $0x20] sm:$0xff]
    %v23 = vld [vmem:[%s0 + $0x28] sm:$0xff]
    %v24 = vld [vmem:[%s0 + $0x30] sm:$0xff]
    %v25 = vld [vmem:[%s0 + $0x38] sm:$0xff]
    %v26 = vld [vmem:[%s0 + $0x40] sm:$0xff]
    %v27 = vld [vmem:[%s0 + $0x48] sm:$0xff]
    %v28 = vld [vmem:[%s0 + $0x50] sm:$0xff]
    %v29 = vld [vmem:[%s0 + $0x58] sm:$0xff]
    %v30 = vld [vmem:[%s0 + $0x60] sm:$0xff]
    %v31 = vld [vmem:[%s0 + $0x68] sm:$0xff]
    %v32 = vld [vmem:[%s0 + $0x70] sm:$0xff]
    %v33 = vld [vmem:[%s0 + $0x78] sm:$0xff]
    %v34 = vld [vmem:[%s1] sm:$0xff]
    %v35 = vld [vmem:[%s1 + $0x8] sm:$0xff]
    %v36 = vld [vmem:[%s1 + $0x10] sm:$0xff]
    %v37 = vld [vmem:[%s1 + $0x18] sm:$0xff]
    %v38 = vld [vmem:[%s1 + $0x20] sm:$0xff]
    %v39 = vld [vmem:[%s1 + $0x28] sm:$0xff]
    %v40 = vld [vmem:[%s1 + $0x30] sm:$0xff]
    %v41 = vld [vmem:[%s1 + $0x38] sm:$0xff]
    %v42 = vld [vmem:[%s1 + $0x40] sm:$0xff]
    %v43 = vld [vmem:[%s1 + $0x48] sm:$0xff]
    %v44 = vld [vmem:[%s1 + $0x50] sm:$0xff]
    %v45 = vld [vmem:[%s1 + $0x58] sm:$0xff]
    %v46 = vld [vmem:[%s1 + $0x60] sm:$0xff]
    %v47 = vld [vmem:[%s1 + $0x68] sm:$0xff]
    %v48 = vld [vmem:[%s1 + $0x70] sm:$0xff]
    %v49 = vld [vmem:[%s1 + $0x78] sm:$0xff]
    %v50 = vld [vmem:[%s2] sm:$0x1]
    %vm51 = vcmask 130048
    %v52 = vsel %vm51, %v18, -inf
    %53 = vmax.xlane.f32.xlu0 %v52
    %v54 = vpop.xlane.xlu0 %53
    %v55 = vsel %vm51, %v19, -inf
    %56 = vmax.xlane.f32.xlu0 %v55
    %v57 = vpop.xlane.xlu0 %56
    %v58 = vsel %vm51, %v20, -inf
    %59 = vmax.xlane.f32.xlu0 %v58
    %v60 = vpop.xlane.xlu0 %59
    %v61 = vsel %vm51, %v21, -inf
    %62 = vmax.xlane.f32.xlu0 %v61
    %v63 = vpop.xlane.xlu0 %62
    %v64 = vsel %vm51, %v22, -inf
    %65 = vmax.xlane.f32.xlu0 %v64
    %v66 = vpop.xlane.xlu0 %65
    %v67 = vsel %vm51, %v23, -inf
    %68 = vmax.xlane.f32.xlu0 %v67
    %v69 = vpop.xlane.xlu0 %68
    %v70 = vsel %vm51, %v24, -inf
    %71 = vmax.xlane.f32.xlu0 %v70
    %v72 = vpop.xlane.xlu0 %71
    %v73 = vsel %vm51, %v25, -inf
    %74 = vmax.xlane.f32.xlu0 %v73
    %v75 = vpop.xlane.xlu0 %74
    %v76 = vsel %vm51, %v26, -inf
    %77 = vmax.xlane.f32.xlu0 %v76
    %v78 = vpop.xlane.xlu0 %77
    %v79 = vsel %vm51, %v27, -inf
    %80 = vmax.xlane.f32.xlu0 %v79
    %v81 = vpop.xlane.xlu0 %80
    %v82 = vsel %vm51, %v28, -inf
    %83 = vmax.xlane.f32.xlu0 %v82
    %v84 = vpop.xlane.xlu0 %83
    %v85 = vsel %vm51, %v29, -inf
    %86 = vmax.xlane.f32.xlu0 %v85
    %v87 = vpop.xlane.xlu0 %86
    %v88 = vsel %vm51, %v30, -inf
    %89 = vmax.xlane.f32.xlu0 %v88
    %v90 = vpop.xlane.xlu0 %89
    %v91 = vsel %vm51, %v31, -inf
    %92 = vmax.xlane.f32.xlu0 %v91
    %v93 = vpop.xlane.xlu0 %92
    %v94 = vsel %vm51, %v32, -inf
    %95 = vmax.xlane.f32.xlu0 %v94
    %v96 = vpop.xlane.xlu0 %95
    %v97 = vsel %vm51, %v33, -inf
    %98 = vmax.xlane.f32.xlu0 %v97
    %v99 = vpop.xlane.xlu0 %98
    %v100 = vsub.f32 %v18, %v54
    %v101 = vsub.f32 %v19, %v57
    %v102 = vsub.f32 %v20, %v60
    %v103 = vsub.f32 %v21, %v63
    %v104 = vsub.f32 %v22, %v66
    %v105 = vsub.f32 %v23, %v69
    %v106 = vsub.f32 %v24, %v72
    %v107 = vsub.f32 %v25, %v75
    %v108 = vsub.f32 %v26, %v78
    %v109 = vsub.f32 %v27, %v81
    %v110 = vsub.f32 %v28, %v84
    %v111 = vsub.f32 %v29, %v87
    %v112 = vsub.f32 %v30, %v90
    %v113 = vsub.f32 %v31, %v93
    %v114 = vsub.f32 %v32, %v96
    %v115 = vsub.f32 %v33, %v99
    %v116 = vmul.f32 %v100, 1.442695
    %v117 = vpow.pop %v116
    %v118 = vmul.f32 %v101, 1.442695
    %v119 = vpow.pop %v118
    %v120 = vmul.f32 %v102, 1.442695
    %v121 = vpow.pop %v120
    %v122 = vmul.f32 %v103, 1.442695
    %v123 = vpow.pop %v122
    %v124 = vmul.f32 %v104, 1.442695
    %v125 = vpow.pop %v124
    %v126 = vmul.f32 %v105, 1.442695
    %v127 = vpow.pop %v126
    %v128 = vmul.f32 %v106, 1.442695
    %v129 = vpow.pop %v128
    %v130 = vmul.f32 %v107, 1.442695
    %v131 = vpow.pop %v130
    %v132 = vmul.f32 %v108, 1.442695
    %v133 = vpow.pop %v132
    %v134 = vmul.f32 %v109, 1.442695
    %v135 = vpow.pop %v134
    %v136 = vmul.f32 %v110, 1.442695
    %v137 = vpow.pop %v136
    %v138 = vmul.f32 %v111, 1.442695
    %v139 = vpow.pop %v138
    %v140 = vmul.f32 %v112, 1.442695
    %v141 = vpow.pop %v140
    %v142 = vmul.f32 %v113, 1.442695
    %v143 = vpow.pop %v142
    %v144 = vmul.f32 %v114, 1.442695
    %v145 = vpow.pop %v144
    %v146 = vmul.f32 %v115, 1.442695
    %v147 = vpow.pop %v146
    %v148 = vsel %vm51, %v117, 0.0
    %149 = vadd.xlane.f32.xlu0 %v148
    %v150 = vpop.xlane.xlu0 %149
    %v151 = vsel %vm51, %v119, 0.0
    %152 = vadd.xlane.f32.xlu0 %v151
    %v153 = vpop.xlane.xlu0 %152
    %v154 = vsel %vm51, %v121, 0.0
    %155 = vadd.xlane.f32.xlu0 %v154
    %v156 = vpop.xlane.xlu0 %155
    %v157 = vsel %vm51, %v123, 0.0
    %158 = vadd.xlane.f32.xlu0 %v157
    %v159 = vpop.xlane.xlu0 %158
    %v160 = vsel %vm51, %v125, 0.0
    %161 = vadd.xlane.f32.xlu0 %v160
    %v162 = vpop.xlane.xlu0 %161
    %v163 = vsel %vm51, %v127, 0.0
    %164 = vadd.xlane.f32.xlu0 %v163
    %v165 = vpop.xlane.xlu0 %164
    %v166 = vsel %vm51, %v129, 0.0
    %167 = vadd.xlane.f32.xlu0 %v166
    %v168 = vpop.xlane.xlu0 %167
    %v169 = vsel %vm51, %v131, 0.0
    %170 = vadd.xlane.f32.xlu0 %v169
    %v171 = vpop.xlane.xlu0 %170
    %v172 = vsel %vm51, %v133, 0.0
    %173 = vadd.xlane.f32.xlu0 %v172
    %v174 = vpop.xlane.xlu0 %173
    %v175 = vsel %vm51, %v135, 0.0
    %176 = vadd.xlane.f32.xlu0 %v175
    %v177 = vpop.xlane.xlu0 %176
    %v178 = vsel %vm51, %v137, 0.0
    %179 = vadd.xlane.f32.xlu0 %v178
    %v180 = vpop.xlane.xlu0 %179
    %v181 = vsel %vm51, %v139, 0.0
    %182 = vadd.xlane.f32.xlu0 %v181
    %v183 = vpop.xlane.xlu0 %182
    %v184 = vsel %vm51, %v141, 0.0
    %185 = vadd.xlane.f32.xlu0 %v184
    %v186 = vpop.xlane.xlu0 %185
    %v187 = vsel %vm51, %v143, 0.0
    %188 = vadd.xlane.f32.xlu0 %v187
    %v189 = vpop.xlane.xlu0 %188
    %v190 = vsel %vm51, %v145, 0.0
    %191 = vadd.xlane.f32.xlu0 %v190
    %v192 = vpop.xlane.xlu0 %191
    %v193 = vsel %vm51, %v147, 0.0
    %194 = vadd.xlane.f32.xlu0 %v193
    %v195 = vpop.xlane.xlu0 %194
    %v196 = vlog2.pop %v150
    %v197 = vmul.f32 %v196, 0.6931472
    %v198 = vlog2.pop %v153
    %v199 = vmul.f32 %v198, 0.6931472
    %v200 = vlog2.pop %v156
    %v201 = vmul.f32 %v200, 0.6931472
    %v202 = vlog2.pop %v159
    %v203 = vmul.f32 %v202, 0.6931472
    %v204 = vlog2.pop %v162
    %v205 = vmul.f32 %v204, 0.6931472
    %v206 = vlog2.pop %v165
    %v207 = vmul.f32 %v206, 0.6931472
    %v208 = vlog2.pop %v168
    %v209 = vmul.f32 %v208, 0.6931472
    %v210 = vlog2.pop %v171
    %v211 = vmul.f32 %v210, 0.6931472
    %v212 = vlog2.pop %v174
    %v213 = vmul.f32 %v212, 0.6931472
    %v214 = vlog2.pop %v177
    %v215 = vmul.f32 %v214, 0.6931472
    %v216 = vlog2.pop %v180
    %v217 = vmul.f32 %v216, 0.6931472
    %v218 = vlog2.pop %v183
    %v219 = vmul.f32 %v218, 0.6931472
    %v220 = vlog2.pop %v186
    %v221 = vmul.f32 %v220, 0.6931472
    %v222 = vlog2.pop %v189
    %v223 = vmul.f32 %v222, 0.6931472
    %v224 = vlog2.pop %v192
    %v225 = vmul.f32 %v224, 0.6931472
    %v226 = vlog2.pop %v195
    %v227 = vmul.f32 %v226, 0.6931472
    %v228 = vlaneseq
    %v229 = vand.u32 %v228, 127
    %230 = vset.pattern.permute.xlu0 0
    %231 = vperm.xlu0 %230, %v34
    %v232 = vpop.permute.xlu0 %231
    %233 = vset.pattern.permute.xlu0 0
    %234 = vperm.xlu0 %233, %v35
    %v235 = vpop.permute.xlu0 %234
    %236 = vset.pattern.permute.xlu0 0
    %237 = vperm.xlu0 %236, %v36
    %v238 = vpop.permute.xlu0 %237
    %239 = vset.pattern.permute.xlu0 0
    %240 = vperm.xlu0 %239, %v37
    %v241 = vpop.permute.xlu0 %240
    %242 = vset.pattern.permute.xlu0 0
    %243 = vperm.xlu0 %242, %v38
    %v244 = vpop.permute.xlu0 %243
    %245 = vset.pattern.permute.xlu0 0
    %246 = vperm.xlu0 %245, %v39
    %v247 = vpop.permute.xlu0 %246
    %248 = vset.pattern.permute.xlu0 0
    %249 = vperm.xlu0 %248, %v40
    %v250 = vpop.permute.xlu0 %249
    %251 = vset.pattern.permute.xlu0 0
    %252 = vperm.xlu0 %251, %v41
    %v253 = vpop.permute.xlu0 %252
    %254 = vset.pattern.permute.xlu0 0
    %255 = vperm.xlu0 %254, %v42
    %v256 = vpop.permute.xlu0 %255
    %257 = vset.pattern.permute.xlu0 0
    %258 = vperm.xlu0 %257, %v43
    %v259 = vpop.permute.xlu0 %258
    %260 = vset.pattern.permute.xlu0 0
    %261 = vperm.xlu0 %260, %v44
    %v262 = vpop.permute.xlu0 %261
    %263 = vset.pattern.permute.xlu0 0
    %264 = vperm.xlu0 %263, %v45
    %v265 = vpop.permute.xlu0 %264
    %266 = vset.pattern.permute.xlu0 0
    %267 = vperm.xlu0 %266, %v46
    %v268 = vpop.permute.xlu0 %267
    %269 = vset.pattern.permute.xlu0 0
    %270 = vperm.xlu0 %269, %v47
    %v271 = vpop.permute.xlu0 %270
    %272 = vset.pattern.permute.xlu0 0
    %273 = vperm.xlu0 %272, %v48
    %v274 = vpop.permute.xlu0 %273
    %275 = vset.pattern.permute.xlu0 0
    %276 = vperm.xlu0 %275, %v49
    %v277 = vpop.permute.xlu0 %276
    %vm278 = vcmp.eq.s32.totalorder %v229, %v232
    %vm279 = vcmp.eq.s32.totalorder %v229, %v235
    %vm280 = vcmp.eq.s32.totalorder %v229, %v238
    %vm281 = vcmp.eq.s32.totalorder %v229, %v241
    %vm282 = vcmp.eq.s32.totalorder %v229, %v244
    %vm283 = vcmp.eq.s32.totalorder %v229, %v247
    %vm284 = vcmp.eq.s32.totalorder %v229, %v250
    %vm285 = vcmp.eq.s32.totalorder %v229, %v253
    %vm286 = vcmp.eq.s32.totalorder %v229, %v256
    %vm287 = vcmp.eq.s32.totalorder %v229, %v259
    %vm288 = vcmp.eq.s32.totalorder %v229, %v262
    %vm289 = vcmp.eq.s32.totalorder %v229, %v265
    %vm290 = vcmp.eq.s32.totalorder %v229, %v268
    %vm291 = vcmp.eq.s32.totalorder %v229, %v271
    %vm292 = vcmp.eq.s32.totalorder %v229, %v274
    %vm293 = vcmp.eq.s32.totalorder %v229, %v277
    %v294 = vsel %vm278, 1, 0
    %v295 = vsel %vm279, 1, 0
    %v296 = vsel %vm280, 1, 0
    %v297 = vsel %vm281, 1, 0
    %v298 = vsel %vm282, 1, 0
    %v299 = vsel %vm283, 1, 0
    %v300 = vsel %vm284, 1, 0
    %v301 = vsel %vm285, 1, 0
    %v302 = vsel %vm286, 1, 0
    %v303 = vsel %vm287, 1, 0
    %v304 = vsel %vm288, 1, 0
    %v305 = vsel %vm289, 1, 0
    %v306 = vsel %vm290, 1, 0
    %v307 = vsel %vm291, 1, 0
    %v308 = vsel %vm292, 1, 0
    %v309 = vsel %vm293, 1, 0
    %v310 = vcvt.s32.f32 %v294
    %v311 = vcvt.s32.f32 %v295
    %v312 = vcvt.s32.f32 %v296
    %v313 = vcvt.s32.f32 %v297
    %v314 = vcvt.s32.f32 %v298
    %v315 = vcvt.s32.f32 %v299
    %v316 = vcvt.s32.f32 %v300
    %v317 = vcvt.s32.f32 %v301
    %v318 = vcvt.s32.f32 %v302
    %v319 = vcvt.s32.f32 %v303
    %v320 = vcvt.s32.f32 %v304
    %v321 = vcvt.s32.f32 %v305
    %v322 = vcvt.s32.f32 %v306
    %v323 = vcvt.s32.f32 %v307
    %v324 = vcvt.s32.f32 %v308
    %v325 = vcvt.s32.f32 %v309
    %vm326 = vcmp.ne.s32.totalorder %v34, 4294967196
    %vm327 = vcmp.ne.s32.totalorder %v35, 4294967196
    %vm328 = vcmp.ne.s32.totalorder %v36, 4294967196
    %vm329 = vcmp.ne.s32.totalorder %v37, 4294967196
    %vm330 = vcmp.ne.s32.totalorder %v38, 4294967196
    %vm331 = vcmp.ne.s32.totalorder %v39, 4294967196
    %vm332 = vcmp.ne.s32.totalorder %v40, 4294967196
    %vm333 = vcmp.ne.s32.totalorder %v41, 4294967196
    %vm334 = vcmp.ne.s32.totalorder %v42, 4294967196
    %vm335 = vcmp.ne.s32.totalorder %v43, 4294967196
    %vm336 = vcmp.ne.s32.totalorder %v44, 4294967196
    %vm337 = vcmp.ne.s32.totalorder %v45, 4294967196
    %vm338 = vcmp.ne.s32.totalorder %v46, 4294967196
    %vm339 = vcmp.ne.s32.totalorder %v47, 4294967196
    %vm340 = vcmp.ne.s32.totalorder %v48, 4294967196
    %vm341 = vcmp.ne.s32.totalorder %v49, 4294967196
    %v342 = vsel %vm326, 1, 0
    %v343 = vsel %vm327, 1, 0
    %v344 = vsel %vm328, 1, 0
    %v345 = vsel %vm329, 1, 0
    %v346 = vsel %vm330, 1, 0
    %v347 = vsel %vm331, 1, 0
    %v348 = vsel %vm332, 1, 0
    %v349 = vsel %vm333, 1, 0
    %v350 = vsel %vm334, 1, 0
    %v351 = vsel %vm335, 1, 0
    %v352 = vsel %vm336, 1, 0
    %v353 = vsel %vm337, 1, 0
    %v354 = vsel %vm338, 1, 0
    %v355 = vsel %vm339, 1, 0
    %v356 = vsel %vm340, 1, 0
    %v357 = vsel %vm341, 1, 0
    %v358 = vcvt.s32.f32 %v342
    %v359 = vcvt.s32.f32 %v343
    %v360 = vcvt.s32.f32 %v344
    %v361 = vcvt.s32.f32 %v345
    %v362 = vcvt.s32.f32 %v346
    %v363 = vcvt.s32.f32 %v347
    %v364 = vcvt.s32.f32 %v348
    %v365 = vcvt.s32.f32 %v349
    %v366 = vcvt.s32.f32 %v350
    %v367 = vcvt.s32.f32 %v351
    %v368 = vcvt.s32.f32 %v352
    %v369 = vcvt.s32.f32 %v353
    %v370 = vcvt.s32.f32 %v354
    %v371 = vcvt.s32.f32 %v355
    %v372 = vcvt.s32.f32 %v356
    %v373 = vcvt.s32.f32 %v357
    %v374 = vmul.f32 %v100, %v310
    %v375 = vmul.f32 %v101, %v311
    %v376 = vmul.f32 %v102, %v312
    %v377 = vmul.f32 %v103, %v313
    %v378 = vmul.f32 %v104, %v314
    %v379 = vmul.f32 %v105, %v315
    %v380 = vmul.f32 %v106, %v316
    %v381 = vmul.f32 %v107, %v317
    %v382 = vmul.f32 %v108, %v318
    %v383 = vmul.f32 %v109, %v319
    %v384 = vmul.f32 %v110, %v320
    %v385 = vmul.f32 %v111, %v321
    %v386 = vmul.f32 %v112, %v322
    %v387 = vmul.f32 %v113, %v323
    %v388 = vmul.f32 %v114, %v324
    %v389 = vmul.f32 %v115, %v325
    %v390 = vsel %vm51, %v374, 0.0
    %391 = vadd.xlane.f32.xlu0 %v390
    %v392 = vpop.xlane.xlu0 %391
    %v393 = vsel %vm51, %v375, 0.0
    %394 = vadd.xlane.f32.xlu0 %v393
    %v395 = vpop.xlane.xlu0 %394
    %v396 = vsel %vm51, %v376, 0.0
    %397 = vadd.xlane.f32.xlu0 %v396
    %v398 = vpop.xlane.xlu0 %397
    %v399 = vsel %vm51, %v377, 0.0
    %400 = vadd.xlane.f32.xlu0 %v399
    %v401 = vpop.xlane.xlu0 %400
    %v402 = vsel %vm51, %v378, 0.0
    %403 = vadd.xlane.f32.xlu0 %v402
    %v404 = vpop.xlane.xlu0 %403
    %v405 = vsel %vm51, %v379, 0.0
    %406 = vadd.xlane.f32.xlu0 %v405
    %v407 = vpop.xlane.xlu0 %406
    %v408 = vsel %vm51, %v380, 0.0
    %409 = vadd.xlane.f32.xlu0 %v408
    %v410 = vpop.xlane.xlu0 %409
    %v411 = vsel %vm51, %v381, 0.0
    %412 = vadd.xlane.f32.xlu0 %v411
    %v413 = vpop.xlane.xlu0 %412
    %v414 = vsel %vm51, %v382, 0.0
    %415 = vadd.xlane.f32.xlu0 %v414
    %v416 = vpop.xlane.xlu0 %415
    %v417 = vsel %vm51, %v383, 0.0
    %418 = vadd.xlane.f32.xlu0 %v417
    %v419 = vpop.xlane.xlu0 %418
    %v420 = vsel %vm51, %v384, 0.0
    %421 = vadd.xlane.f32.xlu0 %v420
    %v422 = vpop.xlane.xlu0 %421
    %v423 = vsel %vm51, %v385, 0.0
    %424 = vadd.xlane.f32.xlu0 %v423
    %v425 = vpop.xlane.xlu0 %424
    %v426 = vsel %vm51, %v386, 0.0
    %427 = vadd.xlane.f32.xlu0 %v426
    %v428 = vpop.xlane.xlu0 %427
    %v429 = vsel %vm51, %v387, 0.0
    %430 = vadd.xlane.f32.xlu0 %v429
    %v431 = vpop.xlane.xlu0 %430
    %v432 = vsel %vm51, %v388, 0.0
    %433 = vadd.xlane.f32.xlu0 %v432
    %v434 = vpop.xlane.xlu0 %433
    %v435 = vsel %vm51, %v389, 0.0
    %436 = vadd.xlane.f32.xlu0 %v435
    %v437 = vpop.xlane.xlu0 %436
    %v438 = vmul.f32 %v117, %v310
    %v439 = vmul.f32 %v119, %v311
    %v440 = vmul.f32 %v121, %v312
    %v441 = vmul.f32 %v123, %v313
    %v442 = vmul.f32 %v125, %v314
    %v443 = vmul.f32 %v127, %v315
    %v444 = vmul.f32 %v129, %v316
    %v445 = vmul.f32 %v131, %v317
    %v446 = vmul.f32 %v133, %v318
    %v447 = vmul.f32 %v135, %v319
    %v448 = vmul.f32 %v137, %v320
    %v449 = vmul.f32 %v139, %v321
    %v450 = vmul.f32 %v141, %v322
    %v451 = vmul.f32 %v143, %v323
    %v452 = vmul.f32 %v145, %v324
    %v453 = vmul.f32 %v147, %v325
    %v454 = vsel %vm51, %v438, 0.0
    %455 = vadd.xlane.f32.xlu0 %v454
    %v456 = vpop.xlane.xlu0 %455
    %v457 = vsel %vm51, %v439, 0.0
    %458 = vadd.xlane.f32.xlu0 %v457
    %v459 = vpop.xlane.xlu0 %458
    %v460 = vsel %vm51, %v440, 0.0
    %461 = vadd.xlane.f32.xlu0 %v460
    %v462 = vpop.xlane.xlu0 %461
    %v463 = vsel %vm51, %v441, 0.0
    %464 = vadd.xlane.f32.xlu0 %v463
    %v465 = vpop.xlane.xlu0 %464
    %v466 = vsel %vm51, %v442, 0.0
    %467 = vadd.xlane.f32.xlu0 %v466
    %v468 = vpop.xlane.xlu0 %467
    %v469 = vsel %vm51, %v443, 0.0
    %470 = vadd.xlane.f32.xlu0 %v469
    %v471 = vpop.xlane.xlu0 %470
    %v472 = vsel %vm51, %v444, 0.0
    %473 = vadd.xlane.f32.xlu0 %v472
    %v474 = vpop.xlane.xlu0 %473
    %v475 = vsel %vm51, %v445, 0.0
    %476 = vadd.xlane.f32.xlu0 %v475
    %v477 = vpop.xlane.xlu0 %476
    %v478 = vsel %vm51, %v446, 0.0
    %479 = vadd.xlane.f32.xlu0 %v478
    %v480 = vpop.xlane.xlu0 %479
    %v481 = vsel %vm51, %v447, 0.0
    %482 = vadd.xlane.f32.xlu0 %v481
    %v483 = vpop.xlane.xlu0 %482
    %v484 = vsel %vm51, %v448, 0.0
    %485 = vadd.xlane.f32.xlu0 %v484
    %v486 = vpop.xlane.xlu0 %485
    %v487 = vsel %vm51, %v449, 0.0
    %488 = vadd.xlane.f32.xlu0 %v487
    %v489 = vpop.xlane.xlu0 %488
    %v490 = vsel %vm51, %v450, 0.0
    %491 = vadd.xlane.f32.xlu0 %v490
    %v492 = vpop.xlane.xlu0 %491
    %v493 = vsel %vm51, %v451, 0.0
    %494 = vadd.xlane.f32.xlu0 %v493
    %v495 = vpop.xlane.xlu0 %494
    %v496 = vsel %vm51, %v452, 0.0
    %497 = vadd.xlane.f32.xlu0 %v496
    %v498 = vpop.xlane.xlu0 %497
    %v499 = vsel %vm51, %v453, 0.0
    %500 = vadd.xlane.f32.xlu0 %v499
    %v501 = vpop.xlane.xlu0 %500
    %v503 = vlaneseq
    %v504 = vshrl.u32 %v503, 7
    %v505 = vsub.s32 0, %v504
    %v506 = vrot.slane %v50, %v505
    %v508 = vmul.f32 %v506, %v310
    %v509 = vmul.f32 %v506, %v311
    %v510 = vmul.f32 %v506, %v312
    %v511 = vmul.f32 %v506, %v313
    %v512 = vmul.f32 %v506, %v314
    %v513 = vmul.f32 %v506, %v315
    %v514 = vmul.f32 %v506, %v316
    %v515 = vmul.f32 %v506, %v317
    %v516 = vmul.f32 %v506, %v318
    %v517 = vmul.f32 %v506, %v319
    %v518 = vmul.f32 %v506, %v320
    %v519 = vmul.f32 %v506, %v321
    %v520 = vmul.f32 %v506, %v322
    %v521 = vmul.f32 %v506, %v323
    %v522 = vmul.f32 %v506, %v324
    %v523 = vmul.f32 %v506, %v325
    %v524 = vsel %vm51, %v508, 0.0
    %525 = vadd.xlane.f32.xlu0 %v524
    %v526 = vpop.xlane.xlu0 %525
    %v527 = vsel %vm51, %v509, 0.0
    %528 = vadd.xlane.f32.xlu0 %v527
    %v529 = vpop.xlane.xlu0 %528
    %v530 = vsel %vm51, %v510, 0.0
    %531 = vadd.xlane.f32.xlu0 %v530
    %v532 = vpop.xlane.xlu0 %531
    %v533 = vsel %vm51, %v511, 0.0
    %534 = vadd.xlane.f32.xlu0 %v533
    %v535 = vpop.xlane.xlu0 %534
    %v536 = vsel %vm51, %v512, 0.0
    %537 = vadd.xlane.f32.xlu0 %v536
    %v538 = vpop.xlane.xlu0 %537
    %v539 = vsel %vm51, %v513, 0.0
    %540 = vadd.xlane.f32.xlu0 %v539
    %v541 = vpop.xlane.xlu0 %540
    %v542 = vsel %vm51, %v514, 0.0
    %543 = vadd.xlane.f32.xlu0 %v542
    %v544 = vpop.xlane.xlu0 %543
    %v545 = vsel %vm51, %v515, 0.0
    %546 = vadd.xlane.f32.xlu0 %v545
    %v547 = vpop.xlane.xlu0 %546
    %v548 = vsel %vm51, %v516, 0.0
    %549 = vadd.xlane.f32.xlu0 %v548
    %v550 = vpop.xlane.xlu0 %549
    %v551 = vsel %vm51, %v517, 0.0
    %552 = vadd.xlane.f32.xlu0 %v551
    %v553 = vpop.xlane.xlu0 %552
    %v554 = vsel %vm51, %v518, 0.0
    %555 = vadd.xlane.f32.xlu0 %v554
    %v556 = vpop.xlane.xlu0 %555
    %v557 = vsel %vm51, %v519, 0.0
    %558 = vadd.xlane.f32.xlu0 %v557
    %v559 = vpop.xlane.xlu0 %558
    %v560 = vsel %vm51, %v520, 0.0
    %561 = vadd.xlane.f32.xlu0 %v560
    %v562 = vpop.xlane.xlu0 %561
    %v563 = vsel %vm51, %v521, 0.0
    %564 = vadd.xlane.f32.xlu0 %v563
    %v565 = vpop.xlane.xlu0 %564
    %v566 = vsel %vm51, %v522, 0.0
    %567 = vadd.xlane.f32.xlu0 %v566
    %v568 = vpop.xlane.xlu0 %567
    %v569 = vsel %vm51, %v523, 0.0
    %570 = vadd.xlane.f32.xlu0 %v569
    %v571 = vpop.xlane.xlu0 %570
    %v572 = vsub.f32 %v392, %v197
    %v573 = vsub.f32 %v395, %v199
    %v574 = vsub.f32 %v398, %v201
    %v575 = vsub.f32 %v401, %v203
    %v576 = vsub.f32 %v404, %v205
    %v577 = vsub.f32 %v407, %v207
    %v578 = vsub.f32 %v410, %v209
    %v579 = vsub.f32 %v413, %v211
    %v580 = vsub.f32 %v416, %v213
    %v581 = vsub.f32 %v419, %v215
    %v582 = vsub.f32 %v422, %v217
    %v583 = vsub.f32 %v425, %v219
    %v584 = vsub.f32 %v428, %v221
    %v585 = vsub.f32 %v431, %v223
    %v586 = vsub.f32 %v434, %v225
    %v587 = vsub.f32 %v437, %v227
    %v588 = vrcp.pop %v150
    %v589 = vmul.f32 %v456, %v588
    %v590 = vrcp.pop %v153
    %v591 = vmul.f32 %v459, %v590
    %v592 = vrcp.pop %v156
    %v593 = vmul.f32 %v462, %v592
    %v594 = vrcp.pop %v159
    %v595 = vmul.f32 %v465, %v594
    %v596 = vrcp.pop %v162
    %v597 = vmul.f32 %v468, %v596
    %v598 = vrcp.pop %v165
    %v599 = vmul.f32 %v471, %v598
    %v600 = vrcp.pop %v168
    %v601 = vmul.f32 %v474, %v600
    %v602 = vrcp.pop %v171
    %v603 = vmul.f32 %v477, %v602
    %v604 = vrcp.pop %v174
    %v605 = vmul.f32 %v480, %v604
    %v606 = vrcp.pop %v177
    %v607 = vmul.f32 %v483, %v606
    %v608 = vrcp.pop %v180
    %v609 = vmul.f32 %v486, %v608
    %v610 = vrcp.pop %v183
    %v611 = vmul.f32 %v489, %v610
    %v612 = vrcp.pop %v186
    %v613 = vmul.f32 %v492, %v612
    %v614 = vrcp.pop %v189
    %v615 = vmul.f32 %v495, %v614
    %v616 = vrcp.pop %v192
    %v617 = vmul.f32 %v498, %v616
    %v618 = vrcp.pop %v195
    %v619 = vmul.f32 %v501, %v618
    %v620 = vsub.f32 1.0, %v589
    %v621 = vsub.f32 1.0, %v591
    %v622 = vsub.f32 1.0, %v593
    %v623 = vsub.f32 1.0, %v595
    %v624 = vsub.f32 1.0, %v597
    %v625 = vsub.f32 1.0, %v599
    %v626 = vsub.f32 1.0, %v601
    %v627 = vsub.f32 1.0, %v603
    %v628 = vsub.f32 1.0, %v605
    %v629 = vsub.f32 1.0, %v607
    %v630 = vsub.f32 1.0, %v609
    %v631 = vsub.f32 1.0, %v611
    %v632 = vsub.f32 1.0, %v613
    %v633 = vsub.f32 1.0, %v615
    %v634 = vsub.f32 1.0, %v617
    %v635 = vsub.f32 1.0, %v619
    %v636 = vmax.f32 %v620, 0.0
    %v637 = vmax.f32 %v621, 0.0
    %v638 = vmax.f32 %v622, 0.0
    %v639 = vmax.f32 %v623, 0.0
    %v640 = vmax.f32 %v624, 0.0
    %v641 = vmax.f32 %v625, 0.0
    %v642 = vmax.f32 %v626, 0.0
    %v643 = vmax.f32 %v627, 0.0
    %v644 = vmax.f32 %v628, 0.0
    %v645 = vmax.f32 %v629, 0.0
    %v646 = vmax.f32 %v630, 0.0
    %v647 = vmax.f32 %v631, 0.0
    %v648 = vmax.f32 %v632, 0.0
    %v649 = vmax.f32 %v633, 0.0
    %v650 = vmax.f32 %v634, 0.0
    %v651 = vmax.f32 %v635, 0.0
    %v652 = vmul.f32 %v636, %v636
    %v653 = vmul.f32 %v637, %v637
    %v654 = vmul.f32 %v638, %v638
    %v655 = vmul.f32 %v639, %v639
    %v656 = vmul.f32 %v640, %v640
    %v657 = vmul.f32 %v641, %v641
    %v658 = vmul.f32 %v642, %v642
    %v659 = vmul.f32 %v643, %v643
    %v660 = vmul.f32 %v644, %v644
    %v661 = vmul.f32 %v645, %v645
    %v662 = vmul.f32 %v646, %v646
    %v663 = vmul.f32 %v647, %v647
    %v664 = vmul.f32 %v648, %v648
    %v665 = vmul.f32 %v649, %v649
    %v666 = vmul.f32 %v650, %v650
    %v667 = vmul.f32 %v651, %v651
    %v668 = vmul.f32 %v652, %v572
    %v669 = vmul.f32 %v653, %v573
    %v670 = vmul.f32 %v654, %v574
    %v671 = vmul.f32 %v655, %v575
    %v672 = vmul.f32 %v656, %v576
    %v673 = vmul.f32 %v657, %v577
    %v674 = vmul.f32 %v658, %v578
    %v675 = vmul.f32 %v659, %v579
    %v676 = vmul.f32 %v660, %v580
    %v677 = vmul.f32 %v661, %v581
    %v678 = vmul.f32 %v662, %v582
    %v679 = vmul.f32 %v663, %v583
    %v680 = vmul.f32 %v664, %v584
    %v681 = vmul.f32 %v665, %v585
    %v682 = vmul.f32 %v666, %v586
    %v683 = vmul.f32 %v667, %v587
    %v684 = vsub.f32 0.0, %v668
    %v685 = vsub.f32 0.0, %v669
    %v686 = vsub.f32 0.0, %v670
    %v687 = vsub.f32 0.0, %v671
    %v688 = vsub.f32 0.0, %v672
    %v689 = vsub.f32 0.0, %v673
    %v690 = vsub.f32 0.0, %v674
    %v691 = vsub.f32 0.0, %v675
    %v692 = vsub.f32 0.0, %v676
    %v693 = vsub.f32 0.0, %v677
    %v694 = vsub.f32 0.0, %v678
    %v695 = vsub.f32 0.0, %v679
    %v696 = vsub.f32 0.0, %v680
    %v697 = vsub.f32 0.0, %v681
    %v698 = vsub.f32 0.0, %v682
    %v699 = vsub.f32 0.0, %v683
    %v700 = vmul.f32 %v684, %v526
    %v701 = vmul.f32 %v685, %v529
    %v702 = vmul.f32 %v686, %v532
    %v703 = vmul.f32 %v687, %v535
    %v704 = vmul.f32 %v688, %v538
    %v705 = vmul.f32 %v689, %v541
    %v706 = vmul.f32 %v690, %v544
    %v707 = vmul.f32 %v691, %v547
    %v708 = vmul.f32 %v692, %v550
    %v709 = vmul.f32 %v693, %v553
    %v710 = vmul.f32 %v694, %v556
    %v711 = vmul.f32 %v695, %v559
    %v712 = vmul.f32 %v696, %v562
    %v713 = vmul.f32 %v697, %v565
    %v714 = vmul.f32 %v698, %v568
    %v715 = vmul.f32 %v699, %v571
    %v716 = vmul.f32 %v700, %v358
    %v717 = vmul.f32 %v701, %v359
    %v718 = vmul.f32 %v702, %v360
    %v719 = vmul.f32 %v703, %v361
    %v720 = vmul.f32 %v704, %v362
    %v721 = vmul.f32 %v705, %v363
    %v722 = vmul.f32 %v706, %v364
    %v723 = vmul.f32 %v707, %v365
    %v724 = vmul.f32 %v708, %v366
    %v725 = vmul.f32 %v709, %v367
    %v726 = vmul.f32 %v710, %v368
    %v727 = vmul.f32 %v711, %v369
    %v728 = vmul.f32 %v712, %v370
    %v729 = vmul.f32 %v713, %v371
    %v730 = vmul.f32 %v714, %v372
    %v731 = vmul.f32 %v715, %v373
    %vm732 = vcmask 7168
    %v733 = vsel %vm732, %v716, 0.0
    %v734 = vsel %vm732, %v717, 0.0
    %v735 = vadd.f32 %v733, %v734
    %v736 = vsel %vm732, %v718, 0.0
    %v737 = vadd.f32 %v735, %v736
    %v738 = vsel %vm732, %v719, 0.0
    %v739 = vadd.f32 %v737, %v738
    %v740 = vsel %vm732, %v720, 0.0
    %v741 = vadd.f32 %v739, %v740
    %v742 = vsel %vm732, %v721, 0.0
    %v743 = vadd.f32 %v741, %v742
    %v744 = vsel %vm732, %v722, 0.0
    %v745 = vadd.f32 %v743, %v744
    %v746 = vsel %vm732, %v723, 0.0
    %v747 = vadd.f32 %v745, %v746
    %v748 = vsel %vm732, %v724, 0.0
    %v749 = vadd.f32 %v747, %v748
    %v750 = vsel %vm732, %v725, 0.0
    %v751 = vadd.f32 %v749, %v750
    %v752 = vsel %vm732, %v726, 0.0
    %v753 = vadd.f32 %v751, %v752
    %v754 = vsel %vm732, %v727, 0.0
    %v755 = vadd.f32 %v753, %v754
    %v756 = vsel %vm732, %v728, 0.0
    %v757 = vadd.f32 %v755, %v756
    %v758 = vsel %vm732, %v729, 0.0
    %v759 = vadd.f32 %v757, %v758
    %v760 = vsel %vm732, %v730, 0.0
    %v761 = vadd.f32 %v759, %v760
    %v762 = vsel %vm732, %v731, 0.0
    %v763 = vadd.f32 %v761, %v762
    %764 = vadd.xlane.f32.xlu0 %v763
    %v765 = vpop.xlane.xlu0 %764
    %v766 = vrot.slane %v765, 4
    %v767 = vadd.f32 %v765, %v766
    %v768 = vrot.slane %v767, 2
    %v769 = vadd.f32 %v767, %v768
    %v770 = vrot.slane %v769, 1
    %v771 = vadd.f32 %v769, %v770
    %s772 = vtos %v771
    %v773 = vmul.f32 %v526, %v358
    %v774 = vmul.f32 %v529, %v359
    %v775 = vmul.f32 %v532, %v360
    %v776 = vmul.f32 %v535, %v361
    %v777 = vmul.f32 %v538, %v362
    %v778 = vmul.f32 %v541, %v363
    %v779 = vmul.f32 %v544, %v364
    %v780 = vmul.f32 %v547, %v365
    %v781 = vmul.f32 %v550, %v366
    %v782 = vmul.f32 %v553, %v367
    %v783 = vmul.f32 %v556, %v368
    %v784 = vmul.f32 %v559, %v369
    %v785 = vmul.f32 %v562, %v370
    %v786 = vmul.f32 %v565, %v371
    %v787 = vmul.f32 %v568, %v372
    %v788 = vmul.f32 %v571, %v373
    %v789 = vsel %vm732, %v773, 0.0
    %v790 = vsel %vm732, %v774, 0.0
    %v791 = vadd.f32 %v789, %v790
    %v792 = vsel %vm732, %v775, 0.0
    %v793 = vadd.f32 %v791, %v792
    %v794 = vsel %vm732, %v776, 0.0
    %v795 = vadd.f32 %v793, %v794
    %v796 = vsel %vm732, %v777, 0.0
    %v797 = vadd.f32 %v795, %v796
    %v798 = vsel %vm732, %v778, 0.0
    %v799 = vadd.f32 %v797, %v798
    %v800 = vsel %vm732, %v779, 0.0
    %v801 = vadd.f32 %v799, %v800
    %v802 = vsel %vm732, %v780, 0.0
    %v803 = vadd.f32 %v801, %v802
    %v804 = vsel %vm732, %v781, 0.0
    %v805 = vadd.f32 %v803, %v804
    %v806 = vsel %vm732, %v782, 0.0
    %v807 = vadd.f32 %v805, %v806
    %v808 = vsel %vm732, %v783, 0.0
    %v809 = vadd.f32 %v807, %v808
    %v810 = vsel %vm732, %v784, 0.0
    %v811 = vadd.f32 %v809, %v810
    %v812 = vsel %vm732, %v785, 0.0
    %v813 = vadd.f32 %v811, %v812
    %v814 = vsel %vm732, %v786, 0.0
    %v815 = vadd.f32 %v813, %v814
    %v816 = vsel %vm732, %v787, 0.0
    %v817 = vadd.f32 %v815, %v816
    %v818 = vsel %vm732, %v788, 0.0
    %v819 = vadd.f32 %v817, %v818
    %820 = vadd.xlane.f32.xlu0 %v819
    %v821 = vpop.xlane.xlu0 %820
    %v822 = vrot.slane %v821, 4
    %v823 = vadd.f32 %v821, %v822
    %v824 = vrot.slane %v823, 2
    %v825 = vadd.f32 %v823, %v824
    %v826 = vrot.slane %v825, 1
    %v827 = vadd.f32 %v825, %v826
    %s828 = vtos %v827
    %v829 = vstv %s772
    %830 = vst [vmem:[#allocation2] sm:$0xff] %v829
    %v831 = vstv %s828
    %832 = vst [vmem:[#allocation4] sm:$0xff] %v831
    // Predicated region
    $region14: #{tpu_custom_call.1} parent=1 // pred_check
      _
    $region15: #{tpu_custom_call.1} parent=1 // pred_check_branch
      %834 = sbr.rel (0) target = $region17
    $region16: #{tpu_custom_call.1} parent=1 // pred_region
      %s836 = ssub.s32 128, 128
      %837 = vsyncadd [#allocation3], %s836
      %s839 = sshll.u32 [#allocation2], 4
      %s840 = int_to_ptr.vmem [resolvable:$true] %s839
      %842 = dma.vmem_to_hbm [thread:$0]  %s840, 128, %s3, [#allocation3]
    $region17: #{tpu_custom_call.1} parent=1 // pred_fallthru
      _
    // Predicated region
    $region18: #{tpu_custom_call.1} parent=1 // pred_check
      _
    $region19: #{tpu_custom_call.1} parent=1 // pred_check_branch
      %844 = sbr.rel (0) target = $region21
    $region20: #{tpu_custom_call.1} parent=1 // pred_region
      %s846 = ssub.s32 128, 128
      %847 = vsyncadd [#allocation5], %s846
      %s849 = sshll.u32 [#allocation4], 4
      %s850 = int_to_ptr.vmem [resolvable:$true] %s849
      %852 = dma.vmem_to_hbm [thread:$0]  %s850, 128, %s4, [#allocation5]
    $region21: #{tpu_custom_call.1} parent=1 // pred_fallthru
      _
    // Predicated region
    $region22: #{tpu_custom_call.1} parent=1 // pred_check
      _
    $region23: #{tpu_custom_call.1} parent=1 // pred_check_branch
      %854 = sbr.rel (0) target = $region25
    $region24: #{tpu_custom_call.1} parent=1 // pred_region
      %855 = dma.done [#allocation3], 128
    $region25: #{tpu_custom_call.1} parent=1 // pred_fallthru
      _
    // Predicated region
    $region26: #{tpu_custom_call.1} parent=1 // pred_check
      _
    $region27: #{tpu_custom_call.1} parent=1 // pred_check_branch
      %857 = sbr.rel (0) target = $region29
    $region28: #{tpu_custom_call.1} parent=1 // pred_region
      %858 = dma.done [#allocation5], 128
    $region29: #{tpu_custom_call.1} parent=1 // pred_fallthru
      _
    %859 = vsyncpa [#allocation3], 1
    %860 = vsyncpa [#allocation5], 1

</llo_original>
